<compile_context>
chip_gen: v5e
topology: v5e:2x2
jax: 0.10.0
libtpu: 0.0.40
codegen_flags: <defaults>
</compile_context>

<pallas_src>
import functools

import jax
import jax.numpy as jnp
from jax import lax
from jax.experimental import pallas as pl
from jax.experimental.pallas import tpu as pltpu


def _pctrans_start_kernel(x_ref, wproj_ref, wt1_ref, wt2_ref, par_ref, out_ref,
                          *, nb, n, c, cq):
    """Whole PCTrans_start forward in one grid step (everything in VMEM).

    x_ref    : (Cin, B*N)      input features, channel-major, batch on lanes
    wproj_ref: (C+2Cq, Cin)    fused [W_lin; W_qk@W_lin; W_v@W_lin]
    wt1_ref  : (C, Cq)         CCT trans_conv weight, pre-scaled by BN1 scale
    wt2_ref  : (C, C)          PCT trans_conv weight, pre-scaled by BN2 scale
    par_ref  : (C+2Cq, 8)      packed per-channel vectors (see wrapper)
    out_ref  : (C, B*N)        output, channel-major, batch on lanes
    """
    wt1 = wt1_ref[...]
    wt2 = wt2_ref[...]

    b_proj = par_ref[:, 0:1]                       # (C+2Cq, 1) fused biases
    scale1 = par_ref[0:c, 1:2]                     # (C, 1) BN1 scale
    shift1 = par_ref[0:c, 2:3]                     # (C, 1) BN1 shift (bias folded)
    scale2 = par_ref[0:c, 3:4]                     # (C, 1) BN2 scale
    shift2 = par_ref[0:c, 4:5]                     # (C, 1) BN2 shift (bias folded)

    # ---- fused CCT projection: one MXU matmul for all batches ----
    proj = jnp.dot(wproj_ref[...], x_ref[...],
                   preferred_element_type=jnp.float32) + b_proj   # (C+2Cq, B*N)
    y_all = proj[0:c, :]                           # (C,  B*N)
    q_all = proj[c:c + cq, :]                      # (Cq, B*N)
    v_all = proj[c + cq:c + 2 * cq, :]             # (Cq, B*N)

    # ---- CCT per-point attention (contracts over the BATCH axis) ----
    # energy[i, j, m] = sum_b Q_b[i, m] * Q_b[j, m].  Built as Cq column slabs
    # e_col[j] of shape (Cq, N) (rows = i): pure VPU slab ops, no 3-D relayouts.
    q_b = [q_all[:, b * n:(b + 1) * n] for b in range(nb)]        # aligned lane slices
    e_col = []
    for j in range(cq):
        acc = q_b[0] * q_b[0][j:j + 1, :]
        for b in range(1, nb):
            acc = acc + q_b[b] * q_b[b][j:j + 1, :]
        e_col.append(acc)                                          # (Cq, N)

    # softmax over j (torch dim=-1) on the slabs
    m = e_col[0]
    for j in range(1, cq):
        m = jnp.maximum(m, e_col[j])
    p_col = [jnp.exp(e_col[j] - m) for j in range(cq)]
    s = p_col[0]
    for j in range(1, cq):
        s = s + p_col[j]
    inv_s = 1.0 / s          # exact on purpose (feeds the PCT Gram logits)
    att_col = [p_col[j] * inv_s for j in range(cq)]

    # normalize over i (torch dim=1): sublane reduction per column slab
    for j in range(cq):
        colsum = jnp.sum(att_col[j], axis=0, keepdims=True)        # (1, N)
        att_col[j] = att_col[j] * (1.0 / (1e-9 + colsum))

    # ---- CCT apply + residual, fused over batches ----
    # x_r[j, b*N+m] = sum_i V[i, b*N+m] * att[i, j, m]
    xr_rows = []
    for j in range(cq):
        att_bn = jnp.concatenate([att_col[j]] * nb, axis=1)        # (Cq, B*N)
        xr_rows.append(jnp.sum(v_all * att_bn, axis=0, keepdims=True))
    xr_all = jnp.concatenate(xr_rows, axis=0)                      # (Cq, B*N)
    conv1 = jnp.dot(wt1, xr_all, preferred_element_type=jnp.float32)  # MXU

    # f1 = y + relu(BN1(y - trans_conv1(x_r)))   (BN/bias pre-folded)
    f1 = y_all + jnp.maximum(y_all * scale1 + shift1 - conv1, 0.0)  # (C, B*N)
    pre2 = f1 * scale2 + shift2                                     # hoisted FMA

    # ---- PCT_start(f1, f1^T, f1): per-batch Gram + tail ----
    for b in range(nb):
        f1b = f1[:, b * n:(b + 1) * n]                              # (C, N)
        g = lax.dot_general(f1b, f1b,
                            dimension_numbers=(((1,), (1,)), ((), ())),
                            preferred_element_type=jnp.float32)     # (C, C)
        m2 = jnp.max(g, axis=-1, keepdims=True)
        p2 = jnp.exp(g - m2)
        att2 = p2 * pl.reciprocal(jnp.sum(p2, axis=-1, keepdims=True),
                                  approx=True)
        # column normalizer divides by possibly-tiny values -> exact division
        att2 = att2 / (1e-9 + jnp.sum(att2, axis=0, keepdims=True))

        # conv2 = (wt2s @ att2) @ f1  (reassociated: (C,C)@(C,C) then (C,C)@(C,N))
        w2a = jnp.dot(wt2, att2, preferred_element_type=jnp.float32)
        conv2 = jnp.dot(w2a, f1b, preferred_element_type=jnp.float32)
        out_b = f1b + jnp.maximum(pre2[:, b * n:(b + 1) * n] - conv2, 0.0)
        out_ref[:, b * n:(b + 1) * n] = out_b.astype(out_ref.dtype)


def pctrans_start_forward(features, params, eps=1e-5):
    """features: (B, N, Cin) -> (B, N, C). Eval-mode BatchNorm semantics."""
    B, N, Cin = features.shape
    f32 = jnp.float32

    w_lin = params["w_lin"].astype(f32)
    b_lin = params["b_lin"].astype(f32)
    w_qk = params["w_qk"].astype(f32)
    w_v = params["w_v"].astype(f32)
    b_v = params["b_v"].astype(f32)
    C = w_lin.shape[0]
    Cq = w_qk.shape[0]
    Cp = C + 2 * Cq

    # Fuse the three CCT projections into one (C+2Cq, Cin) weight + bias.
    w_proj = jnp.concatenate([w_lin, w_qk @ w_lin, w_v @ w_lin], axis=0)
    b_proj = jnp.concatenate([b_lin, w_qk @ b_lin, w_v @ b_lin + b_v], axis=0)

    # Fold eval-mode BN + conv bias:  (t - W@x - b)*s + shift
    #   = t*s - (s*W)@x + (beta - (mean + b)*s)
    s1 = (params["bn1_gamma"] / jnp.sqrt(params["bn1_var"] + eps)).astype(f32)
    shift1 = (params["bn1_beta"] - (params["bn1_mean"] + params["b_t1"]) * s1).astype(f32)
    s2 = (params["bn2_gamma"] / jnp.sqrt(params["bn2_var"] + eps)).astype(f32)
    shift2 = (params["bn2_beta"] - (params["bn2_mean"] + params["b_t2"]) * s2).astype(f32)
    w_t1s = (s1[:, None] * params["w_t1"]).astype(f32)   # (C, Cq)
    w_t2s = (s2[:, None] * params["w_t2"]).astype(f32)   # (C, C)

    # Pack all per-channel vectors into one small VMEM operand.
    packed = jnp.zeros((Cp, 8), f32)
    packed = packed.at[:, 0].set(b_proj)
    packed = packed.at[:C, 1].set(s1)
    packed = packed.at[:C, 2].set(shift1)
    packed = packed.at[:C, 3].set(s2)
    packed = packed.at[:C, 4].set(shift2)

    # Layout plumbing (wrapper-side): channel-major with batch concatenated on
    # the lane axis, so the kernel sees one lane-dense (Cin, B*N) slab.
    x_cm = jnp.transpose(features, (2, 0, 1)).reshape(Cin, B * N).astype(f32)

    kernel = functools.partial(_pctrans_start_kernel, nb=B, n=N, c=C, cq=Cq)

    grid_spec = pltpu.PrefetchScalarGridSpec(
        num_scalar_prefetch=0,
        # One grid step: the CCT attention couples batches (contracts over B),
        # and the whole problem is tiny, so keep everything VMEM-resident.
        grid=(1,),
        in_specs=[
            pl.BlockSpec((Cin, B * N), lambda i: (0, 0)),  # features slab
            pl.BlockSpec((Cp, Cin), lambda i: (0, 0)),     # fused projection weight
            pl.BlockSpec((C, Cq), lambda i: (0, 0)),       # trans_conv1 (scaled)
            pl.BlockSpec((C, C), lambda i: (0, 0)),        # trans_conv2 (scaled)
            pl.BlockSpec((Cp, 8), lambda i: (0, 0)),       # packed per-channel params
        ],
        out_specs=pl.BlockSpec((C, B * N), lambda i: (0, 0)),
    )

    out_cm = pl.pallas_call(
        kernel,
        out_shape=jax.ShapeDtypeStruct((C, B * N), features.dtype),
        grid_spec=grid_spec,
        compiler_params=pltpu.CompilerParams(
            dimension_semantics=("arbitrary",)),
    )(x_cm, w_proj, w_t1s, w_t2s, packed)

    # Final .permute(0, 2, 1) of the PyTorch module (layout plumbing).
    return jnp.transpose(out_cm.reshape(C, B, N), (1, 2, 0))


def pctrans_start_reference(features, params, eps=1e-5):
    """Pure-JAX reference of the PyTorch forward (eval-mode BN, unfolded)."""
    w_lin, b_lin = params["w_lin"], params["b_lin"]
    w_qk = params["w_qk"]
    w_v, b_v = params["w_v"], params["b_v"]
    w_t1, b_t1 = params["w_t1"], params["b_t1"]
    w_t2, b_t2 = params["w_t2"], params["b_t2"]

    # --- CCT (choice='nomax') ---
    y = jnp.einsum("bni,ci->bcn", features, w_lin) + b_lin[None, :, None]
    q = jnp.einsum("qc,bcn->bqn", w_qk, y)
    k = q                                             # q_conv.weight == k_conv.weight
    v = jnp.einsum("vc,bcn->bvn", w_v, y) + b_v[None, :, None]
    x_q = jnp.transpose(q, (2, 0, 1))                 # (N, B, Cq)
    x_k = jnp.transpose(k, (2, 1, 0))                 # (N, Cq, B)
    x_v = jnp.transpose(v, (2, 0, 1))                 # (N, B, Cq)
    energy = jnp.einsum("nib,nbj->nij", x_k, x_q)
    att = jax.nn.softmax(energy, axis=-1)
    att = att / (1e-9 + jnp.sum(att, axis=1, keepdims=True))
    x_r = jnp.einsum("nbi,nij->nbj", x_v, att)
    x_r = jnp.transpose(x_r, (1, 2, 0))               # (B, Cq, N)
    conv1 = jnp.einsum("ck,bkn->bcn", w_t1, x_r) + b_t1[None, :, None]
    t1 = y - conv1
    bn1 = ((t1 - params["bn1_mean"][None, :, None])
           / jnp.sqrt(params["bn1_var"][None, :, None] + eps)
           * params["bn1_gamma"][None, :, None] + params["bn1_beta"][None, :, None])
    f1 = y + jnp.maximum(bn1, 0.0)                    # (B, C, N)

    # --- PCT_start(f1, f1.permute(0,2,1), f1) ---
    energy2 = jnp.einsum("bcn,bdn->bcd", f1, f1)
    att2 = jax.nn.softmax(energy2, axis=-1)
    att2 = att2 / (1e-9 + jnp.sum(att2, axis=1, keepdims=True))
    x_r2 = jnp.einsum("bcd,bdn->bcn", att2, f1)
    conv2 = jnp.einsum("oc,bcn->bon", w_t2, x_r2) + b_t2[None, :, None]
    t2 = f1 - conv2
    bn2 = ((t2 - params["bn2_mean"][None, :, None])
           / jnp.sqrt(params["bn2_var"][None, :, None] + eps)
           * params["bn2_gamma"][None, :, None] + params["bn2_beta"][None, :, None])
    out = f1 + jnp.maximum(bn2, 0.0)
    return jnp.transpose(out, (0, 2, 1))              # (B, N, C)


if __name__ == "__main__":
    # PCTrans_start fixes channels = 13 (CCT(inc=13, channels=13, step=4)).
    B, N = 2, 128          # lane-dense point axis (multiple of 128)
    C, STEP = 13, 4
    CQ = C // STEP         # 3

    key = jax.random.PRNGKey(0)
    keys = jax.random.split(key, 16)

    features = jax.random.normal(keys[0], (B, N, C), dtype=jnp.float32)

    params = dict(
        w_lin=jax.random.normal(keys[1], (C, C), jnp.float32) * 0.2,
        b_lin=jax.random.normal(keys[2], (C,), jnp.float32) * 0.1,
        w_qk=jax.random.normal(keys[3], (CQ, C), jnp.float32) * 0.3,
        w_v=jax.random.normal(keys[4], (CQ, C), jnp.float32) * 0.3,
        b_v=jax.random.normal(keys[5], (CQ,), jnp.float32) * 0.1,
        w_t1=jax.random.normal(keys[6], (C, CQ), jnp.float32) * 0.2,
        b_t1=jax.random.normal(keys[7], (C,), jnp.float32) * 0.1,
        w_t2=jax.random.normal(keys[8], (C, C), jnp.float32) * 0.2,
        b_t2=jax.random.normal(keys[9], (C,), jnp.float32) * 0.1,
        bn1_gamma=1.0 + 0.1 * jax.random.normal(keys[10], (C,), jnp.float32),
        bn1_beta=0.1 * jax.random.normal(keys[11], (C,), jnp.float32),
        bn1_mean=0.1 * jax.random.normal(keys[12], (C,), jnp.float32),
        bn1_var=1.0 + 0.1 * jnp.abs(jax.random.normal(keys[13], (C,), jnp.float32)),
        bn2_gamma=1.0 + 0.1 * jax.random.normal(keys[14], (C,), jnp.float32),
        bn2_beta=0.1 * jax.random.normal(keys[15], (C,), jnp.float32),
        bn2_mean=jnp.zeros((C,), jnp.float32),
        bn2_var=jnp.ones((C,), jnp.float32),
    )

    out = pctrans_start_forward(features, params)
    out = jax.block_until_ready(out)
    assert out.shape == (B, N, C)

    ref = pctrans_start_reference(features, params)
    # Tolerance tightened vs. the previous version (2e-2 -> 5e-3): covers the
    # single EUP approx-reciprocal in the PCT softmax denominator (~2^-12 rel)
    # plus f32 reassociation from the folded projection/BN, amplified through
    # the sharp (N-scaled) PCT Gram softmax.
    max_err = float(jnp.max(jnp.abs(out - ref)))
    assert jnp.allclose(out, ref, atol=5e-3, rtol=5e-3), (
        f"mismatch vs reference (max abs err {max_err})")

    print("KERNEL_OK")
</pallas_src>

<mosaic_0001>
module attributes {stable_mosaic.version = 11 : i64} {
  func.func @_pctrans_start_kernel(%arg0: i32, %arg1: memref<13x256xf32, #tpu.memory_space<vmem>>, %arg2: memref<19x13xf32, #tpu.memory_space<vmem>>, %arg3: memref<13x3xf32, #tpu.memory_space<vmem>>, %arg4: memref<13x13xf32, #tpu.memory_space<vmem>>, %arg5: memref<19x8xf32, #tpu.memory_space<vmem>>, %arg6: memref<13x256xf32, #tpu.memory_space<vmem>>) attributes {dimension_semantics = [#tpu.dimension_semantics<arbitrary>], iteration_bounds = array<i64: 1>, scalar_prefetch = 0 : i64, scratch_operands = 0 : i64, tpu.core_type = #tpu.core_type<tc>, window_params = [{pipeline_mode = #tpu.pipeline_mode<synchronous>, transform_indices = @transform_0, window_bounds = array<i64: 13, 256>}, {pipeline_mode = #tpu.pipeline_mode<synchronous>, transform_indices = @transform_1, window_bounds = array<i64: 19, 13>}, {pipeline_mode = #tpu.pipeline_mode<synchronous>, transform_indices = @transform_2, window_bounds = array<i64: 13, 3>}, {pipeline_mode = #tpu.pipeline_mode<synchronous>, transform_indices = @transform_3, window_bounds = array<i64: 13, 13>}, {pipeline_mode = #tpu.pipeline_mode<synchronous>, transform_indices = @transform_4, window_bounds = array<i64: 19, 8>}, {pipeline_mode = #tpu.pipeline_mode<synchronous>, transform_indices = @transform_5, window_bounds = array<i64: 13, 256>}]} {
    %c0 = arith.constant 0 : index
    %c0_0 = arith.constant 0 : index
    %0 = vector.load %arg3[%c0, %c0_0] : memref<13x3xf32, #tpu.memory_space<vmem>>, vector<13x3xf32>
    %c0_1 = arith.constant 0 : index
    %c0_2 = arith.constant 0 : index
    %1 = vector.load %arg4[%c0_1, %c0_2] : memref<13x13xf32, #tpu.memory_space<vmem>>, vector<13x13xf32>
    %c0_3 = arith.constant 0 : index
    %c0_4 = arith.constant 0 : index
    %2 = vector.load %arg5[%c0_3, %c0_4] : memref<19x8xf32, #tpu.memory_space<vmem>>, vector<19x1xf32>
    %c0_5 = arith.constant 0 : index
    %c1 = arith.constant 1 : index
    %3 = vector.load %arg5[%c0_5, %c1] : memref<19x8xf32, #tpu.memory_space<vmem>>, vector<13x1xf32>
    %c0_6 = arith.constant 0 : index
    %c2 = arith.constant 2 : index
    %4 = vector.load %arg5[%c0_6, %c2] : memref<19x8xf32, #tpu.memory_space<vmem>>, vector<13x1xf32>
    %c0_7 = arith.constant 0 : index
    %c3 = arith.constant 3 : index
    %5 = vector.load %arg5[%c0_7, %c3] : memref<19x8xf32, #tpu.memory_space<vmem>>, vector<13x1xf32>
    %c0_8 = arith.constant 0 : index
    %c4 = arith.constant 4 : index
    %6 = vector.load %arg5[%c0_8, %c4] : memref<19x8xf32, #tpu.memory_space<vmem>>, vector<13x1xf32>
    %c0_9 = arith.constant 0 : index
    %c0_10 = arith.constant 0 : index
    %7 = vector.load %arg2[%c0_9, %c0_10] : memref<19x13xf32, #tpu.memory_space<vmem>>, vector<19x13xf32>
    %c0_11 = arith.constant 0 : index
    %c0_12 = arith.constant 0 : index
    %8 = vector.load %arg1[%c0_11, %c0_12] : memref<13x256xf32, #tpu.memory_space<vmem>>, vector<13x256xf32>
    %cst = arith.constant dense<0.000000e+00> : vector<19x256xf32>
    %9 = tpu.matmul %7, %8, %cst {dimension_numbers = #tpu.dot_dimension_numbers<[1], [0], [0], [1], [0, 0, 1, 1], [], []>} : vector<19x13xf32>, vector<13x256xf32>, vector<19x256xf32> -> vector<19x256xf32>
    %10 = vector.broadcast %2 : vector<19x1xf32> to vector<19x256xf32>
    %11 = arith.addf %9, %10 : vector<19x256xf32>
    %12 = vector.extract_strided_slice %11 {offsets = [0, 0], sizes = [13, 256], strides = [1, 1]} : vector<19x256xf32> to vector<13x256xf32>
    %13 = vector.extract_strided_slice %11 {offsets = [13, 0], sizes = [3, 256], strides = [1, 1]} : vector<19x256xf32> to vector<3x256xf32>
    %14 = vector.extract_strided_slice %11 {offsets = [16, 0], sizes = [3, 256], strides = [1, 1]} : vector<19x256xf32> to vector<3x256xf32>
    %15 = vector.extract_strided_slice %13 {offsets = [0, 0], sizes = [3, 128], strides = [1, 1]} : vector<3x256xf32> to vector<3x128xf32>
    %16 = vector.extract_strided_slice %13 {offsets = [0, 128], sizes = [3, 128], strides = [1, 1]} : vector<3x256xf32> to vector<3x128xf32>
    %17 = vector.extract_strided_slice %15 {offsets = [0, 0], sizes = [1, 128], strides = [1, 1]} : vector<3x128xf32> to vector<1x128xf32>
    %18 = vector.broadcast %17 : vector<1x128xf32> to vector<3x128xf32>
    %19 = arith.mulf %15, %18 : vector<3x128xf32>
    %20 = vector.extract_strided_slice %16 {offsets = [0, 0], sizes = [1, 128], strides = [1, 1]} : vector<3x128xf32> to vector<1x128xf32>
    %21 = vector.broadcast %20 : vector<1x128xf32> to vector<3x128xf32>
    %22 = arith.mulf %16, %21 : vector<3x128xf32>
    %23 = arith.addf %19, %22 : vector<3x128xf32>
    %24 = vector.extract_strided_slice %15 {offsets = [1, 0], sizes = [1, 128], strides = [1, 1]} : vector<3x128xf32> to vector<1x128xf32>
    %25 = vector.broadcast %24 : vector<1x128xf32> to vector<3x128xf32>
    %26 = arith.mulf %15, %25 : vector<3x128xf32>
    %27 = vector.extract_strided_slice %16 {offsets = [1, 0], sizes = [1, 128], strides = [1, 1]} : vector<3x128xf32> to vector<1x128xf32>
    %28 = vector.broadcast %27 : vector<1x128xf32> to vector<3x128xf32>
    %29 = arith.mulf %16, %28 : vector<3x128xf32>
    %30 = arith.addf %26, %29 : vector<3x128xf32>
    %31 = vector.extract_strided_slice %15 {offsets = [2, 0], sizes = [1, 128], strides = [1, 1]} : vector<3x128xf32> to vector<1x128xf32>
    %32 = vector.broadcast %31 : vector<1x128xf32> to vector<3x128xf32>
    %33 = arith.mulf %15, %32 : vector<3x128xf32>
    %34 = vector.extract_strided_slice %16 {offsets = [2, 0], sizes = [1, 128], strides = [1, 1]} : vector<3x128xf32> to vector<1x128xf32>
    %35 = vector.broadcast %34 : vector<1x128xf32> to vector<3x128xf32>
    %36 = arith.mulf %16, %35 : vector<3x128xf32>
    %37 = arith.addf %33, %36 : vector<3x128xf32>
    %38 = arith.maximumf %23, %30 : vector<3x128xf32>
    %39 = arith.maximumf %38, %37 : vector<3x128xf32>
    %40 = arith.subf %23, %39 : vector<3x128xf32>
    %41 = math.exp %40 : vector<3x128xf32>
    %42 = arith.subf %30, %39 : vector<3x128xf32>
    %43 = math.exp %42 : vector<3x128xf32>
    %44 = arith.subf %37, %39 : vector<3x128xf32>
    %45 = math.exp %44 : vector<3x128xf32>
    %46 = arith.addf %41, %43 : vector<3x128xf32>
    %47 = arith.addf %46, %45 : vector<3x128xf32>
    %cst_13 = arith.constant 1.000000e+00 : f32
    %48 = vector.broadcast %cst_13 : f32 to vector<3x128xf32>
    %49 = arith.divf %48, %47 : vector<3x128xf32>
    %50 = arith.mulf %41, %49 : vector<3x128xf32>
    %51 = arith.mulf %43, %49 : vector<3x128xf32>
    %52 = arith.mulf %45, %49 : vector<3x128xf32>
    %cst_14 = arith.constant dense<0.000000e+00> : vector<128xf32>
    %53 = vector.multi_reduction <add>, %50, %cst_14 [0] : vector<3x128xf32> to vector<128xf32>
    %54 = vector.shape_cast %53 : vector<128xf32> to vector<1x128xf32>
    %cst_15 = arith.constant 9.99999971E-10 : f32
    %55 = vector.broadcast %cst_15 : f32 to vector<1x128xf32>
    %56 = arith.addf %55, %54 : vector<1x128xf32>
    %cst_16 = arith.constant 1.000000e+00 : f32
    %57 = vector.broadcast %cst_16 : f32 to vector<1x128xf32>
    %58 = arith.divf %57, %56 : vector<1x128xf32>
    %59 = vector.broadcast %58 : vector<1x128xf32> to vector<3x128xf32>
    %60 = arith.mulf %50, %59 : vector<3x128xf32>
    %cst_17 = arith.constant dense<0.000000e+00> : vector<128xf32>
    %61 = vector.multi_reduction <add>, %51, %cst_17 [0] : vector<3x128xf32> to vector<128xf32>
    %62 = vector.shape_cast %61 : vector<128xf32> to vector<1x128xf32>
    %cst_18 = arith.constant 9.99999971E-10 : f32
    %63 = vector.broadcast %cst_18 : f32 to vector<1x128xf32>
    %64 = arith.addf %63, %62 : vector<1x128xf32>
    %cst_19 = arith.constant 1.000000e+00 : f32
    %65 = vector.broadcast %cst_19 : f32 to vector<1x128xf32>
    %66 = arith.divf %65, %64 : vector<1x128xf32>
    %67 = vector.broadcast %66 : vector<1x128xf32> to vector<3x128xf32>
    %68 = arith.mulf %51, %67 : vector<3x128xf32>
    %cst_20 = arith.constant dense<0.000000e+00> : vector<128xf32>
    %69 = vector.multi_reduction <add>, %52, %cst_20 [0] : vector<3x128xf32> to vector<128xf32>
    %70 = vector.shape_cast %69 : vector<128xf32> to vector<1x128xf32>
    %cst_21 = arith.constant 9.99999971E-10 : f32
    %71 = vector.broadcast %cst_21 : f32 to vector<1x128xf32>
    %72 = arith.addf %71, %70 : vector<1x128xf32>
    %cst_22 = arith.constant 1.000000e+00 : f32
    %73 = vector.broadcast %cst_22 : f32 to vector<1x128xf32>
    %74 = arith.divf %73, %72 : vector<1x128xf32>
    %75 = vector.broadcast %74 : vector<1x128xf32> to vector<3x128xf32>
    %76 = arith.mulf %52, %75 : vector<3x128xf32>
    %77 = tpu.concatenate %60, %60 in 1 : vector<3x128xf32>, vector<3x128xf32> -> vector<3x256xf32>
    %78 = arith.mulf %14, %77 : vector<3x256xf32>
    %cst_23 = arith.constant dense<0.000000e+00> : vector<256xf32>
    %79 = vector.multi_reduction <add>, %78, %cst_23 [0] : vector<3x256xf32> to vector<256xf32>
    %80 = vector.shape_cast %79 : vector<256xf32> to vector<1x256xf32>
    %81 = tpu.concatenate %68, %68 in 1 : vector<3x128xf32>, vector<3x128xf32> -> vector<3x256xf32>
    %82 = arith.mulf %14, %81 : vector<3x256xf32>
    %cst_24 = arith.constant dense<0.000000e+00> : vector<256xf32>
    %83 = vector.multi_reduction <add>, %82, %cst_24 [0] : vector<3x256xf32> to vector<256xf32>
    %84 = vector.shape_cast %83 : vector<256xf32> to vector<1x256xf32>
    %85 = tpu.concatenate %76, %76 in 1 : vector<3x128xf32>, vector<3x128xf32> -> vector<3x256xf32>
    %86 = arith.mulf %14, %85 : vector<3x256xf32>
    %cst_25 = arith.constant dense<0.000000e+00> : vector<256xf32>
    %87 = vector.multi_reduction <add>, %86, %cst_25 [0] : vector<3x256xf32> to vector<256xf32>
    %88 = vector.shape_cast %87 : vector<256xf32> to vector<1x256xf32>
    %89 = tpu.concatenate %80, %84, %88 in 0 : vector<1x256xf32>, vector<1x256xf32>, vector<1x256xf32> -> vector<3x256xf32>
    %cst_26 = arith.constant dense<0.000000e+00> : vector<13x256xf32>
    %90 = tpu.matmul %0, %89, %cst_26 {dimension_numbers = #tpu.dot_dimension_numbers<[1], [0], [0], [1], [0, 0, 1, 1], [], []>} : vector<13x3xf32>, vector<3x256xf32>, vector<13x256xf32> -> vector<13x256xf32>
    %91 = vector.broadcast %3 : vector<13x1xf32> to vector<13x256xf32>
    %92 = arith.mulf %12, %91 : vector<13x256xf32>
    %93 = vector.broadcast %4 : vector<13x1xf32> to vector<13x256xf32>
    %94 = arith.addf %92, %93 : vector<13x256xf32>
    %95 = arith.subf %94, %90 : vector<13x256xf32>
    %cst_27 = arith.constant 0.000000e+00 : f32
    %96 = vector.broadcast %cst_27 : f32 to vector<13x256xf32>
    %97 = arith.maximumf %95, %96 : vector<13x256xf32>
    %98 = arith.addf %12, %97 : vector<13x256xf32>
    %99 = vector.broadcast %5 : vector<13x1xf32> to vector<13x256xf32>
    %100 = arith.mulf %98, %99 : vector<13x256xf32>
    %101 = vector.broadcast %6 : vector<13x1xf32> to vector<13x256xf32>
    %102 = arith.addf %100, %101 : vector<13x256xf32>
    %103 = vector.extract_strided_slice %98 {offsets = [0, 0], sizes = [13, 128], strides = [1, 1]} : vector<13x256xf32> to vector<13x128xf32>
    %cst_28 = arith.constant dense<0.000000e+00> : vector<13x13xf32>
    %104 = tpu.matmul %103, %103, %cst_28 {dimension_numbers = #tpu.dot_dimension_numbers<[1], [1], [0], [0], [0, 0, 1, 0], [], []>} : vector<13x128xf32>, vector<13x128xf32>, vector<13x13xf32> -> vector<13x13xf32>
    %cst_29 = arith.constant dense<0xFF800000> : vector<13xf32>
    %105 = vector.multi_reduction <maximumf>, %104, %cst_29 [1] : vector<13x13xf32> to vector<13xf32>
    %106 = vector.shape_cast %105 : vector<13xf32> to vector<13x1xf32>
    %107 = vector.broadcast %106 : vector<13x1xf32> to vector<13x13xf32>
    %108 = arith.subf %104, %107 : vector<13x13xf32>
    %109 = math.exp %108 : vector<13x13xf32>
    %cst_30 = arith.constant dense<0.000000e+00> : vector<13xf32>
    %110 = vector.multi_reduction <add>, %109, %cst_30 [1] : vector<13x13xf32> to vector<13xf32>
    %111 = vector.shape_cast %110 : vector<13xf32> to vector<13x1xf32>
    %112 = tpu.reciprocal %111 {approx = true} : vector<13x1xf32> -> vector<13x1xf32>
    %113 = vector.broadcast %112 : vector<13x1xf32> to vector<13x13xf32>
    %114 = arith.mulf %109, %113 : vector<13x13xf32>
    %cst_31 = arith.constant dense<0.000000e+00> : vector<13xf32>
    %115 = vector.multi_reduction <add>, %114, %cst_31 [0] : vector<13x13xf32> to vector<13xf32>
    %116 = vector.shape_cast %115 : vector<13xf32> to vector<1x13xf32>
    %cst_32 = arith.constant 9.99999971E-10 : f32
    %117 = vector.broadcast %cst_32 : f32 to vector<1x13xf32>
    %118 = arith.addf %117, %116 : vector<1x13xf32>
    %119 = vector.broadcast %118 : vector<1x13xf32> to vector<13x13xf32>
    %120 = arith.divf %114, %119 : vector<13x13xf32>
    %cst_33 = arith.constant dense<0.000000e+00> : vector<13x13xf32>
    %121 = tpu.matmul %1, %120, %cst_33 {dimension_numbers = #tpu.dot_dimension_numbers<[1], [0], [0], [1], [0, 0, 1, 1], [], []>} : vector<13x13xf32>, vector<13x13xf32>, vector<13x13xf32> -> vector<13x13xf32>
    %cst_34 = arith.constant dense<0.000000e+00> : vector<13x128xf32>
    %122 = tpu.matmul %121, %103, %cst_34 {dimension_numbers = #tpu.dot_dimension_numbers<[1], [0], [0], [1], [0, 0, 1, 1], [], []>} : vector<13x13xf32>, vector<13x128xf32>, vector<13x128xf32> -> vector<13x128xf32>
    %123 = vector.extract_strided_slice %102 {offsets = [0, 0], sizes = [13, 128], strides = [1, 1]} : vector<13x256xf32> to vector<13x128xf32>
    %124 = arith.subf %123, %122 : vector<13x128xf32>
    %cst_35 = arith.constant 0.000000e+00 : f32
    %125 = vector.broadcast %cst_35 : f32 to vector<13x128xf32>
    %126 = arith.maximumf %124, %125 : vector<13x128xf32>
    %127 = arith.addf %103, %126 : vector<13x128xf32>
    %c0_36 = arith.constant 0 : index
    %c0_37 = arith.constant 0 : index
    %128 = vector.load %arg6[%c0_36, %c0_37] : memref<13x256xf32, #tpu.memory_space<vmem>>, vector<13x128xf32>
    tpu.vector_store %arg6[%c0_36, %c0_37], %127 {strides = array<i32>} : memref<13x256xf32, #tpu.memory_space<vmem>>, vector<13x128xf32>,
    %129 = vector.extract_strided_slice %98 {offsets = [0, 128], sizes = [13, 128], strides = [1, 1]} : vector<13x256xf32> to vector<13x128xf32>
    %cst_38 = arith.constant dense<0.000000e+00> : vector<13x13xf32>
    %130 = tpu.matmul %129, %129, %cst_38 {dimension_numbers = #tpu.dot_dimension_numbers<[1], [1], [0], [0], [0, 0, 1, 0], [], []>} : vector<13x128xf32>, vector<13x128xf32>, vector<13x13xf32> -> vector<13x13xf32>
    %cst_39 = arith.constant dense<0xFF800000> : vector<13xf32>
    %131 = vector.multi_reduction <maximumf>, %130, %cst_39 [1] : vector<13x13xf32> to vector<13xf32>
    %132 = vector.shape_cast %131 : vector<13xf32> to vector<13x1xf32>
    %133 = vector.broadcast %132 : vector<13x1xf32> to vector<13x13xf32>
    %134 = arith.subf %130, %133 : vector<13x13xf32>
    %135 = math.exp %134 : vector<13x13xf32>
    %cst_40 = arith.constant dense<0.000000e+00> : vector<13xf32>
    %136 = vector.multi_reduction <add>, %135, %cst_40 [1] : vector<13x13xf32> to vector<13xf32>
    %137 = vector.shape_cast %136 : vector<13xf32> to vector<13x1xf32>
    %138 = tpu.reciprocal %137 {approx = true} : vector<13x1xf32> -> vector<13x1xf32>
    %139 = vector.broadcast %138 : vector<13x1xf32> to vector<13x13xf32>
    %140 = arith.mulf %135, %139 : vector<13x13xf32>
    %cst_41 = arith.constant dense<0.000000e+00> : vector<13xf32>
    %141 = vector.multi_reduction <add>, %140, %cst_41 [0] : vector<13x13xf32> to vector<13xf32>
    %142 = vector.shape_cast %141 : vector<13xf32> to vector<1x13xf32>
    %cst_42 = arith.constant 9.99999971E-10 : f32
    %143 = vector.broadcast %cst_42 : f32 to vector<1x13xf32>
    %144 = arith.addf %143, %142 : vector<1x13xf32>
    %145 = vector.broadcast %144 : vector<1x13xf32> to vector<13x13xf32>
    %146 = arith.divf %140, %145 : vector<13x13xf32>
    %cst_43 = arith.constant dense<0.000000e+00> : vector<13x13xf32>
    %147 = tpu.matmul %1, %146, %cst_43 {dimension_numbers = #tpu.dot_dimension_numbers<[1], [0], [0], [1], [0, 0, 1, 1], [], []>} : vector<13x13xf32>, vector<13x13xf32>, vector<13x13xf32> -> vector<13x13xf32>
    %cst_44 = arith.constant dense<0.000000e+00> : vector<13x128xf32>
    %148 = tpu.matmul %147, %129, %cst_44 {dimension_numbers = #tpu.dot_dimension_numbers<[1], [0], [0], [1], [0, 0, 1, 1], [], []>} : vector<13x13xf32>, vector<13x128xf32>, vector<13x128xf32> -> vector<13x128xf32>
    %149 = vector.extract_strided_slice %102 {offsets = [0, 128], sizes = [13, 128], strides = [1, 1]} : vector<13x256xf32> to vector<13x128xf32>
    %150 = arith.subf %149, %148 : vector<13x128xf32>
    %cst_45 = arith.constant 0.000000e+00 : f32
    %151 = vector.broadcast %cst_45 : f32 to vector<13x128xf32>
    %152 = arith.maximumf %150, %151 : vector<13x128xf32>
    %153 = arith.addf %129, %152 : vector<13x128xf32>
    %c0_46 = arith.constant 0 : index
    %c128 = arith.constant 128 : index
    %154 = vector.load %arg6[%c0_46, %c128] : memref<13x256xf32, #tpu.memory_space<vmem>>, vector<13x128xf32>
    tpu.vector_store %arg6[%c0_46, %c128], %153 {strides = array<i32>} : memref<13x256xf32, #tpu.memory_space<vmem>>, vector<13x128xf32>,
    return
  }
  func.func @transform_0(%arg0: i32) -> (i32, i32) {
    %c0_i32 = arith.constant 0 : i32
    %c0_i32_0 = arith.constant 0 : i32
    %c0_i32_1 = arith.constant 0 : i32
    return %c0_i32, %c0_i32_0 : i32, i32
  }
  func.func @transform_1(%arg0: i32) -> (i32, i32) {
    %c0_i32 = arith.constant 0 : i32
    %c0_i32_0 = arith.constant 0 : i32
    %c0_i32_1 = arith.constant 0 : i32
    return %c0_i32, %c0_i32_0 : i32, i32
  }
  func.func @transform_2(%arg0: i32) -> (i32, i32) {
    %c0_i32 = arith.constant 0 : i32
    %c0_i32_0 = arith.constant 0 : i32
    %c0_i32_1 = arith.constant 0 : i32
    return %c0_i32, %c0_i32_0 : i32, i32
  }
  func.func @transform_3(%arg0: i32) -> (i32, i32) {
    %c0_i32 = arith.constant 0 : i32
    %c0_i32_0 = arith.constant 0 : i32
    %c0_i32_1 = arith.constant 0 : i32
    return %c0_i32, %c0_i32_0 : i32, i32
  }
  func.func @transform_4(%arg0: i32) -> (i32, i32) {
    %c0_i32 = arith.constant 0 : i32
    %c0_i32_0 = arith.constant 0 : i32
    %c0_i32_1 = arith.constant 0 : i32
    return %c0_i32, %c0_i32_0 : i32, i32
  }
  func.func @transform_5(%arg0: i32) -> (i32, i32) {
    %c0_i32 = arith.constant 0 : i32
    %c0_i32_0 = arith.constant 0 : i32
    %c0_i32_1 = arith.constant 0 : i32
    return %c0_i32, %c0_i32_0 : i32, i32
  }
}

</mosaic_0001>

<llo_original>
// kernel: tpu_custom_call.1
$region0: #{tpu_custom_call.1}
  #allocation0 [shape = 'u32[]', space=smem, size = 0x4, offset = 0x4, fixed_abs, tag = 'smem constant byte address 0x4 - core index']
  #allocation1 [shape = 'u32[72,128]{1,0:T(1,128)}', space=vmem, size = 0x9000, scoped, tag = 'internal scratch']
  %s0 = inlined_call_operand.vmem [shape: f32[13,256], index: 0, kind: input, shape index: {}]
  %s1 = inlined_call_operand.vmem [shape: f32[19,13], index: 1, kind: input, shape index: {}]
  %s2 = inlined_call_operand.vmem [shape: f32[13,3], index: 2, kind: input, shape index: {}]
  %s3 = inlined_call_operand.vmem [shape: f32[13,13], index: 3, kind: input, shape index: {}]
  %s4 = inlined_call_operand.vmem [shape: f32[19,8], index: 4, kind: input, shape index: {}]
  %s5 = inlined_call_operand.hbm [shape: f32[13,256], index: 5, kind: output, shape index: {}]
  %s6 = sld [smem:[#allocation0]]
  $region30: #{tpu_custom_call.1} parent=0
    _
  %s8 = ssub.s32 1, %s6
  %s9 = scalar_select 0, %s8, %s6
  $region1: #{tpu_custom_call.1} parent=0
    #allocation2 [shape = 'u8[16384]{0}', space=vmem, size = 0x4000, scoped, tag = 'output window, operand 0, single buffered']
    #allocation3 [shape = 's32[1]{0}', space=sflag, size = 0x4, scoped, tag = 'scoped memory for tpu_custom_call.1']
    %10 = vsyncpa [#allocation3], 0
    // Predicated region
    $region2: #{tpu_custom_call.1} parent=1 // pred_check
      _
    $region3: #{tpu_custom_call.1} parent=1 // pred_check_branch
      %12 = sbr.rel (0) target = $region5
    $region4: #{tpu_custom_call.1} parent=1 // pred_region
      _
    $region5: #{tpu_custom_call.1} parent=1 // pred_fallthru
      _
    // Predicated region
    $region6: #{tpu_custom_call.1} parent=1 // pred_check
      _
    $region7: #{tpu_custom_call.1} parent=1 // pred_check_branch
      %14 = sbr.rel (0) target = $region9
    $region8: #{tpu_custom_call.1} parent=1 // pred_region
      _
    $region9: #{tpu_custom_call.1} parent=1 // pred_fallthru
      _
    // Predicated region
    $region10: #{tpu_custom_call.1} parent=1 // pred_check
      _
    $region11: #{tpu_custom_call.1} parent=1 // pred_check_branch
      %16 = sbr.rel (0) target = $region13
    $region12: #{tpu_custom_call.1} parent=1 // pred_region
      _
    $region13: #{tpu_custom_call.1} parent=1 // pred_fallthru
      _
    // Predicated region
    $region14: #{tpu_custom_call.1} parent=1 // pred_check
      _
    $region15: #{tpu_custom_call.1} parent=1 // pred_check_branch
      %18 = sbr.rel (0) target = $region17
    $region16: #{tpu_custom_call.1} parent=1 // pred_region
      _
    $region17: #{tpu_custom_call.1} parent=1 // pred_fallthru
      _
    // Predicated region
    $region18: #{tpu_custom_call.1} parent=1 // pred_check
      _
    $region19: #{tpu_custom_call.1} parent=1 // pred_check_branch
      %20 = sbr.rel (0) target = $region21
    $region20: #{tpu_custom_call.1} parent=1 // pred_region
      _
    $region21: #{tpu_custom_call.1} parent=1 // pred_fallthru
      _
    %v21 = vld [vmem:[%s2] sm:$0xff]
    %v22 = vld [vmem:[%s2 + $0x8] sm:$0x1f]
    %v23 = vld [vmem:[%s3] sm:$0xff]
    %v24 = vld [vmem:[%s3 + $0x8] sm:$0x1f]
    %v25 = vld [vmem:[%s4] sm:$0xff]
    %v26 = vld [vmem:[%s4 + $0x8] sm:$0xff]
    %v27 = vld [vmem:[%s4 + $0x10] sm:$0x7]
    %v28 = vld [vmem:[%s4 + $0x8] sm:$0x1f]
    %v29 = vld [vmem:[%s1] sm:$0xff]
    %v30 = vld [vmem:[%s1 + $0x8] sm:$0xff]
    %v31 = vld [vmem:[%s1 + $0x10] sm:$0x7]
    %v32 = vld [vmem:[%s0] sm:$0xff]
    %v33 = vld [vmem:[%s0 + $0x8] sm:$0xff]
    %v34 = vld [vmem:[%s0 + $0x10] sm:$0x1f]
    %v35 = vld [vmem:[%s0 + $0x18] sm:$0x1f]
    %37 = vset.pattern.permute.xlu0 0
    %38 = vperm.xlu0 %37, %v25
    %v39 = vpop.permute.xlu0 %38
    %42 = vset.pattern.permute.xlu0 0
    %43 = vperm.xlu0 %42, %v26
    %v44 = vpop.permute.xlu0 %43
    %47 = vset.pattern.permute.xlu0 0
    %48 = vperm.xlu0 %47, %v27
    %v49 = vpop.permute.xlu0 %48
    %vm51 = vcmask 105472
    %v53 = vsel %vm51, %v29, 0
    %v56 = vsel %vm51, %v30, 0
    %v59 = vsel %vm51, %v31, 0
    %vm61 = vcmask 1044480
    %v63 = vsel %vm61, %v34, 0
    %v66 = vsel %vm61, %v35, 0
    %68 = vmatpush.msra.mxu0 0.0
    %69 = vmatpush.msra.mxu0 0.0
    %70 = vmatpush.msra.mxu0 0.0
    %71 = vmatpush.msra.mxu0 0.0
    %72 = vmatpush.msra.mxu0 0.0
    %73 = vmatpush.msra.mxu0 0.0
    %74 = vmatpush.msra.mxu0 0.0
    %75 = vmatpush.msra.mxu0 0.0
    %76 = vmatpush.msra.mxu0 0.0
    %77 = vmatpush.msra.mxu0 0.0
    %78 = vmatpush.msra.mxu0 0.0
    %79 = vmatpush.msra.mxu0 0.0
    %80 = vmatpush.msra.mxu0 0.0
    %81 = vmatpush.msra.mxu0 0.0
    %82 = vmatpush.msra.mxu0 %v63
    %83 = vmatpush.msra.mxu0 %v32
    %84 = vmatmul.f32.gmra.mxu0 %v53
    %v85 = vpop.f32.mrf.mxu0
    %v86 = vadd.f32 %v39, %v85
    %87 = vmatmul.f32.gmra.mxu0 %v56
    %v88 = vpop.f32.mrf.mxu0
    %v89 = vadd.f32 %v44, %v88
    %90 = vmatmul.f32.gmra.mxu0 %v59
    %v91 = vpop.f32.mrf.mxu0
    %v92 = vadd.f32 %v49, %v91
    %93 = vdwg.mxu0
    %94 = vmatpush.msra.mxu0 0.0
    %95 = vmatpush.msra.mxu0 0.0
    %96 = vmatpush.msra.mxu0 0.0
    %97 = vmatpush.msra.mxu0 0.0
    %98 = vmatpush.msra.mxu0 0.0
    %99 = vmatpush.msra.mxu0 0.0
    %100 = vmatpush.msra.mxu0 0.0
    %101 = vmatpush.msra.mxu0 0.0
    %102 = vmatpush.msra.mxu0 0.0
    %103 = vmatpush.msra.mxu0 0.0
    %104 = vmatpush.msra.mxu0 0.0
    %105 = vmatpush.msra.mxu0 0.0
    %106 = vmatpush.msra.mxu0 0.0
    %107 = vmatpush.msra.mxu0 0.0
    %108 = vmatpush.msra.mxu0 %v66
    %109 = vmatpush.msra.mxu0 %v33
    %110 = vmatmul.f32.gmra.mxu0 %v53
    %v111 = vpop.f32.mrf.mxu0
    %v112 = vadd.f32 %v39, %v111
    %113 = vmatmul.f32.gmra.mxu0 %v56
    %v114 = vpop.f32.mrf.mxu0
    %v115 = vadd.f32 %v44, %v114
    %116 = vmatmul.f32.gmra.mxu0 %v59
    %v117 = vpop.f32.mrf.mxu0
    %v118 = vadd.f32 %v49, %v117
    %119 = vdwg.mxu0
    %v120 = vperm.slane %v89, 5
    %v121 = vmul.f32 %v89, %v120
    %v122 = vperm.slane %v115, 5
    %v123 = vmul.f32 %v115, %v122
    %v124 = vadd.f32 %v121, %v123
    %v125 = vperm.slane %v89, 6
    %v126 = vmul.f32 %v89, %v125
    %v127 = vperm.slane %v115, 6
    %v128 = vmul.f32 %v115, %v127
    %v129 = vadd.f32 %v126, %v128
    %v130 = vperm.slane %v89, 7
    %v131 = vmul.f32 %v89, %v130
    %v132 = vperm.slane %v115, 7
    %v133 = vmul.f32 %v115, %v132
    %v134 = vadd.f32 %v131, %v133
    %v135 = vmax.f32 %v124, %v129
    %v136 = vmax.f32 %v135, %v134
    %v137 = vsub.f32 %v124, %v136
    %v138 = vmul.f32 %v137, 1.442695
    %v139 = vpow.pop %v138
    %v140 = vsub.f32 %v129, %v136
    %v141 = vmul.f32 %v140, 1.442695
    %v142 = vpow.pop %v141
    %v143 = vsub.f32 %v134, %v136
    %v144 = vmul.f32 %v143, 1.442695
    %v145 = vpow.pop %v144
    %v146 = vadd.f32 %v139, %v142
    %v147 = vadd.f32 %v146, %v145
    %v148 = vrcp.pop %v147
    %v149 = vmul.f32 %v147, %v148
    %v150 = vsub.f32 1.0, %v149
    %v151 = vmul.f32 %v148, %v150
    %v152 = vadd.f32 %v148, %v151
    %vm153 = vweird.f32 %v147
    %vm154 = vweird.f32 %v148
    %vm155 = vmor %vm153, %vm154
    %v156 = vsel %vm155, %v148, %v152
    %v157 = vand.u32 2147483647, %v147
    %vm158 = vcmp.eq.f32.partialorder %v157, 8.507059e+37
    %v159 = vand.u32 %v147, 2147483648
    %v160 = vor.u32 1.1754944e-38, %v159
    %v161 = vsel %vm158, %v160, %v156
    %v162 = vmul.f32 1.0, %v161
    %v163 = vmul.f32 %v139, %v162
    %v164 = vmul.f32 %v142, %v162
    %v165 = vmul.f32 %v145, %v162
    %v167 = vrot.slane %v163, 5
    %vm169 = vcmask 1042432
    %v170 = vsel %vm169, %v167, 0.0
    %v171 = vrot.slane %v170, 4
    %v172 = vadd.f32 %v170, %v171
    %v173 = vrot.slane %v172, 2
    %v174 = vadd.f32 %v172, %v173
    %v175 = vrot.slane %v174, 1
    %v176 = vadd.f32 %v174, %v175
    %v177 = vadd.f32 %v176, 1e-09
    %v178 = vrcp.pop %v177
    %v179 = vmul.f32 %v177, %v178
    %v180 = vsub.f32 1.0, %v179
    %v181 = vmul.f32 %v178, %v180
    %v182 = vadd.f32 %v178, %v181
    %vm183 = vweird.f32 %v177
    %vm184 = vweird.f32 %v178
    %vm185 = vmor %vm183, %vm184
    %v186 = vsel %vm185, %v178, %v182
    %v187 = vand.u32 2147483647, %v177
    %vm188 = vcmp.eq.f32.partialorder %v187, 8.507059e+37
    %v189 = vand.u32 %v177, 2147483648
    %v190 = vor.u32 1.1754944e-38, %v189
    %v191 = vsel %vm188, %v190, %v186
    %v192 = vmul.f32 1.0, %v191
    %v193 = vmul.f32 %v163, %v192
    %v195 = vrot.slane %v164, 5
    %v197 = vsel %vm169, %v195, 0.0
    %v198 = vrot.slane %v197, 4
    %v199 = vadd.f32 %v197, %v198
    %v200 = vrot.slane %v199, 2
    %v201 = vadd.f32 %v199, %v200
    %v202 = vrot.slane %v201, 1
    %v203 = vadd.f32 %v201, %v202
    %v204 = vadd.f32 %v203, 1e-09
    %v205 = vrcp.pop %v204
    %v206 = vmul.f32 %v204, %v205
    %v207 = vsub.f32 1.0, %v206
    %v208 = vmul.f32 %v205, %v207
    %v209 = vadd.f32 %v205, %v208
    %vm210 = vweird.f32 %v204
    %vm211 = vweird.f32 %v205
    %vm212 = vmor %vm210, %vm211
    %v213 = vsel %vm212, %v205, %v209
    %v214 = vand.u32 2147483647, %v204
    %vm215 = vcmp.eq.f32.partialorder %v214, 8.507059e+37
    %v216 = vand.u32 %v204, 2147483648
    %v217 = vor.u32 1.1754944e-38, %v216
    %v218 = vsel %vm215, %v217, %v213
    %v219 = vmul.f32 1.0, %v218
    %v220 = vmul.f32 %v164, %v219
    %v222 = vrot.slane %v165, 5
    %v224 = vsel %vm169, %v222, 0.0
    %v225 = vrot.slane %v224, 4
    %v226 = vadd.f32 %v224, %v225
    %v227 = vrot.slane %v226, 2
    %v228 = vadd.f32 %v226, %v227
    %v229 = vrot.slane %v228, 1
    %v230 = vadd.f32 %v228, %v229
    %v231 = vadd.f32 %v230, 1e-09
    %v232 = vrcp.pop %v231
    %v233 = vmul.f32 %v231, %v232
    %v234 = vsub.f32 1.0, %v233
    %v235 = vmul.f32 %v232, %v234
    %v236 = vadd.f32 %v232, %v235
    %vm237 = vweird.f32 %v231
    %vm238 = vweird.f32 %v232
    %vm239 = vmor %vm237, %vm238
    %v240 = vsel %vm239, %v232, %v236
    %v241 = vand.u32 2147483647, %v231
    %vm242 = vcmp.eq.f32.partialorder %v241, 8.507059e+37
    %v243 = vand.u32 %v231, 2147483648
    %v244 = vor.u32 1.1754944e-38, %v243
    %v245 = vsel %vm242, %v244, %v240
    %v246 = vmul.f32 1.0, %v245
    %v247 = vmul.f32 %v165, %v246
    %v249 = vrot.slane %v193, 5
    %v251 = vmul.f32 %v92, %v249
    %v252 = vmul.f32 %v118, %v249
    %v253 = vsel %vm169, %v251, 0.0
    %v254 = vrot.slane %v253, 4
    %v255 = vadd.f32 %v253, %v254
    %v256 = vrot.slane %v255, 2
    %v257 = vadd.f32 %v255, %v256
    %v258 = vrot.slane %v257, 1
    %v259 = vadd.f32 %v257, %v258
    %v260 = vsel %vm169, %v252, 0.0
    %v261 = vrot.slane %v260, 4
    %v262 = vadd.f32 %v260, %v261
    %v263 = vrot.slane %v262, 2
    %v264 = vadd.f32 %v262, %v263
    %v265 = vrot.slane %v264, 1
    %v266 = vadd.f32 %v264, %v265
    %v268 = vrot.slane %v220, 5
    %v270 = vmul.f32 %v92, %v268
    %v271 = vmul.f32 %v118, %v268
    %v272 = vsel %vm169, %v270, 0.0
    %v273 = vrot.slane %v272, 4
    %v274 = vadd.f32 %v272, %v273
    %v275 = vrot.slane %v274, 2
    %v276 = vadd.f32 %v274, %v275
    %v277 = vrot.slane %v276, 1
    %v278 = vadd.f32 %v276, %v277
    %v279 = vsel %vm169, %v271, 0.0
    %v280 = vrot.slane %v279, 4
    %v281 = vadd.f32 %v279, %v280
    %v282 = vrot.slane %v281, 2
    %v283 = vadd.f32 %v281, %v282
    %v284 = vrot.slane %v283, 1
    %v285 = vadd.f32 %v283, %v284
    %v287 = vrot.slane %v247, 5
    %v289 = vmul.f32 %v92, %v287
    %v290 = vmul.f32 %v118, %v287
    %v291 = vsel %vm169, %v289, 0.0
    %v292 = vrot.slane %v291, 4
    %v293 = vadd.f32 %v291, %v292
    %v294 = vrot.slane %v293, 2
    %v295 = vadd.f32 %v293, %v294
    %v296 = vrot.slane %v295, 1
    %v297 = vadd.f32 %v295, %v296
    %v298 = vsel %vm169, %v290, 0.0
    %v299 = vrot.slane %v298, 4
    %v300 = vadd.f32 %v298, %v299
    %v301 = vrot.slane %v300, 2
    %v302 = vadd.f32 %v300, %v301
    %v303 = vrot.slane %v302, 1
    %v304 = vadd.f32 %v302, %v303
    %vm305 = vcmask 1040384
    %v306 = vsel %vm305, %v259, %v278
    %v307 = vsel %vm305, %v266, %v285
    %vm308 = vcmask 1041408
    %v309 = vsel %vm308, %v306, %v297
    %v310 = vsel %vm308, %v307, %v304
    %vm311 = vcmask 23552
    %v313 = vsel %vm311, %v21, 0
    %v316 = vsel %vm311, %v22, 0
    %v319 = vsel %vm169, %v309, 0
    %v322 = vsel %vm169, %v310, 0
    %324 = vmatpush.msra.mxu0 0.0
    %325 = vmatpush.msra.mxu0 0.0
    %326 = vmatpush.msra.mxu0 0.0
    %327 = vmatpush.msra.mxu0 0.0
    %328 = vmatpush.msra.mxu0 0.0
    %329 = vmatpush.msra.mxu0 0.0
    %330 = vmatpush.msra.mxu0 0.0
    %331 = vmatpush.msra.mxu0 0.0
    %332 = vmatpush.msra.mxu0 0.0
    %333 = vmatpush.msra.mxu0 0.0
    %334 = vmatpush.msra.mxu0 0.0
    %335 = vmatpush.msra.mxu0 0.0
    %336 = vmatpush.msra.mxu0 0.0
    %337 = vmatpush.msra.mxu0 0.0
    %338 = vmatpush.msra.mxu0 0.0
    %339 = vmatpush.msra.mxu0 %v319
    %340 = vmatmul.f32.gmra.mxu0 %v313
    %v341 = vpop.f32.mrf.mxu0
    %v342 = vadd.f32 0.0, %v341
    %343 = vmatmul.f32.gmra.mxu0 %v316
    %v344 = vpop.f32.mrf.mxu0
    %v345 = vadd.f32 0.0, %v344
    %346 = vdwg.mxu0
    %347 = vmatpush.msra.mxu0 0.0
    %348 = vmatpush.msra.mxu0 0.0
    %349 = vmatpush.msra.mxu0 0.0
    %350 = vmatpush.msra.mxu0 0.0
    %351 = vmatpush.msra.mxu0 0.0
    %352 = vmatpush.msra.mxu0 0.0
    %353 = vmatpush.msra.mxu0 0.0
    %354 = vmatpush.msra.mxu0 0.0
    %355 = vmatpush.msra.mxu0 0.0
    %356 = vmatpush.msra.mxu0 0.0
    %357 = vmatpush.msra.mxu0 0.0
    %358 = vmatpush.msra.mxu0 0.0
    %359 = vmatpush.msra.mxu0 0.0
    %360 = vmatpush.msra.mxu0 0.0
    %361 = vmatpush.msra.mxu0 0.0
    %362 = vmatpush.msra.mxu0 %v322
    %363 = vmatmul.f32.gmra.mxu0 %v313
    %v364 = vpop.f32.mrf.mxu0
    %v365 = vadd.f32 0.0, %v364
    %366 = vmatmul.f32.gmra.mxu0 %v316
    %v367 = vpop.f32.mrf.mxu0
    %v368 = vadd.f32 0.0, %v367
    %369 = vdwg.mxu0
    %370 = vset.pattern.permute.xlu0 1
    %371 = vperm.xlu0 %370, %v25
    %v372 = vpop.permute.xlu0 %371
    %375 = vset.pattern.permute.xlu0 1
    %376 = vperm.xlu0 %375, %v28
    %v377 = vpop.permute.xlu0 %376
    %v379 = vmul.f32 %v86, %v372
    %v380 = vmul.f32 %v112, %v372
    %v381 = vmul.f32 %v89, %v377
    %v382 = vmul.f32 %v115, %v377
    %383 = vset.pattern.permute.xlu0 2
    %384 = vperm.xlu0 %383, %v25
    %v385 = vpop.permute.xlu0 %384
    %387 = vset.pattern.permute.xlu0 2
    %388 = vperm.xlu0 %387, %v28
    %v389 = vpop.permute.xlu0 %388
    %v391 = vadd.f32 %v379, %v385
    %v392 = vadd.f32 %v380, %v385
    %v393 = vadd.f32 %v381, %v389
    %v394 = vadd.f32 %v382, %v389
    %v395 = vsub.f32 %v391, %v342
    %v396 = vsub.f32 %v392, %v365
    %v397 = vsub.f32 %v393, %v345
    %v398 = vsub.f32 %v394, %v368
    %v399 = vmax.f32 %v395, 0.0
    %v400 = vmax.f32 %v396, 0.0
    %v401 = vmax.f32 %v397, 0.0
    %v402 = vmax.f32 %v398, 0.0
    %v403 = vadd.f32 %v86, %v399
    %v404 = vadd.f32 %v112, %v400
    %v405 = vadd.f32 %v89, %v401
    %v406 = vadd.f32 %v115, %v402
    %407 = vset.pattern.permute.xlu0 3
    %408 = vperm.xlu0 %407, %v25
    %v409 = vpop.permute.xlu0 %408
    %411 = vset.pattern.permute.xlu0 3
    %412 = vperm.xlu0 %411, %v28
    %v413 = vpop.permute.xlu0 %412
    %v415 = vmul.f32 %v403, %v409
    %v416 = vmul.f32 %v404, %v409
    %v417 = vmul.f32 %v405, %v413
    %v418 = vmul.f32 %v406, %v413
    %419 = vset.pattern.permute.xlu0 4
    %420 = vperm.xlu0 %419, %v25
    %v421 = vpop.permute.xlu0 %420
    %423 = vset.pattern.permute.xlu0 4
    %424 = vperm.xlu0 %423, %v28
    %v425 = vpop.permute.xlu0 %424
    %v427 = vadd.f32 %v415, %v421
    %v428 = vadd.f32 %v416, %v421
    %v429 = vadd.f32 %v417, %v425
    %v430 = vadd.f32 %v418, %v425
    %431 = vmatpush.xpose.msra.mxu0 0.0
    %432 = vmatpush.xpose.msra.mxu0 0.0
    %433 = vmatpush.xpose.msra.mxu0 0.0
    %434 = vmatpush.xpose.msra.mxu0 0.0
    %435 = vmatpush.xpose.msra.mxu0 0.0
    %436 = vmatpush.xpose.msra.mxu0 0.0
    %437 = vmatpush.xpose.msra.mxu0 0.0
    %438 = vmatpush.xpose.msra.mxu0 0.0
    %439 = vmatpush.xpose.msra.mxu0 0.0
    %440 = vmatpush.xpose.msra.mxu0 0.0
    %441 = vmatpush.xpose.msra.mxu0 0.0
    %442 = vmatpush.xpose.msra.mxu0 0.0
    %443 = vmatpush.xpose.msra.mxu0 0.0
    %444 = vmatpush.xpose.msra.mxu0 0.0
    %445 = vmatpush.xpose.msra.mxu0 %v405
    %446 = vmatpush.xpose.msra.mxu0 %v403
    %447 = vmatmul.f32.gmra.mxu0 %v403
    %v448 = vpop.f32.mrf.mxu0
    %v449 = vadd.f32 0.0, %v448
    %450 = vmatmul.f32.gmra.mxu0 %v405
    %v451 = vpop.f32.mrf.mxu0
    %v452 = vadd.f32 0.0, %v451
    %453 = vdwg.mxu0
    %v454 = vsel %vm51, %v449, -inf
    %455 = vmax.xlane.f32.xlu0 %v454
    %v456 = vpop.xlane.xlu0 %455
    %vm457 = vcmask 102400
    %v458 = vsel %vm457, %v452, -inf
    %459 = vmax.xlane.f32.xlu0 %v458
    %v460 = vpop.xlane.xlu0 %459
    %v461 = vsub.f32 %v449, %v456
    %v462 = vsub.f32 %v452, %v460
    %v463 = vmul.f32 %v461, 1.442695
    %v464 = vpow.pop %v463
    %v465 = vmul.f32 %v462, 1.442695
    %v466 = vpow.pop %v465
    %v467 = vsel %vm51, %v464, 0.0
    %468 = vadd.xlane.f32.xlu0 %v467
    %v469 = vpop.xlane.xlu0 %468
    %v470 = vsel %vm457, %v466, 0.0
    %471 = vadd.xlane.f32.xlu0 %v470
    %v472 = vpop.xlane.xlu0 %471
    %v473 = vrcp.pop %v469
    %v474 = vrcp.pop %v472
    %v475 = vmul.f32 %v464, %v473
    %v476 = vmul.f32 %v466, %v474
    %v477 = vsel %vm51, %v475, 0.0
    %v478 = vsel %vm457, %v476, 0.0
    %v479 = vadd.f32 %v477, %v478
    %v480 = vrot.slane %v479, 4
    %v481 = vadd.f32 %v479, %v480
    %v482 = vrot.slane %v481, 2
    %v483 = vadd.f32 %v481, %v482
    %v484 = vrot.slane %v483, 1
    %v485 = vadd.f32 %v483, %v484
    %v486 = vadd.f32 %v485, 1e-09
    %v487 = vrcp.pop %v486
    %v488 = vmul.f32 %v486, %v487
    %v489 = vsub.f32 1.0, %v488
    %v490 = vmul.f32 %v487, %v489
    %v491 = vadd.f32 %v487, %v490
    %vm492 = vweird.f32 %v486
    %vm493 = vweird.f32 %v487
    %vm494 = vmor %vm492, %vm493
    %v495 = vsel %vm494, %v487, %v491
    %v496 = vand.u32 2147483647, %v486
    %vm497 = vcmp.eq.f32.partialorder %v496, 8.507059e+37
    %v498 = vand.u32 %v486, 2147483648
    %v499 = vor.u32 1.1754944e-38, %v498
    %v500 = vsel %vm497, %v499, %v495
    %v501 = vmul.f32 %v475, %v500
    %v502 = vmul.f32 %v476, %v500
    %v504 = vsel %vm51, %v23, 0
    %v507 = vsel %vm51, %v24, 0
    %v510 = vsel %vm61, %v502, 0
    %512 = vmatpush.msra.mxu0 0.0
    %513 = vmatpush.msra.mxu0 0.0
    %514 = vmatpush.msra.mxu0 0.0
    %515 = vmatpush.msra.mxu0 0.0
    %516 = vmatpush.msra.mxu0 0.0
    %517 = vmatpush.msra.mxu0 0.0
    %518 = vmatpush.msra.mxu0 0.0
    %519 = vmatpush.msra.mxu0 0.0
    %520 = vmatpush.msra.mxu0 0.0
    %521 = vmatpush.msra.mxu0 0.0
    %522 = vmatpush.msra.mxu0 0.0
    %523 = vmatpush.msra.mxu0 0.0
    %524 = vmatpush.msra.mxu0 0.0
    %525 = vmatpush.msra.mxu0 0.0
    %526 = vmatpush.msra.mxu0 %v510
    %527 = vmatpush.msra.mxu0 %v501
    %528 = vmatmul.f32.gmra.mxu0 %v504
    %v529 = vpop.f32.mrf.mxu0
    %v530 = vadd.f32 0.0, %v529
    %531 = vmatmul.f32.gmra.mxu0 %v507
    %v532 = vpop.f32.mrf.mxu0
    %v533 = vadd.f32 0.0, %v532
    %534 = vdwg.mxu0
    %v536 = vsel %vm51, %v530, 0
    %v539 = vsel %vm51, %v533, 0
    %v542 = vsel %vm61, %v405, 0
    %544 = vmatpush.msra.mxu0 0.0
    %545 = vmatpush.msra.mxu0 0.0
    %546 = vmatpush.msra.mxu0 0.0
    %547 = vmatpush.msra.mxu0 0.0
    %548 = vmatpush.msra.mxu0 0.0
    %549 = vmatpush.msra.mxu0 0.0
    %550 = vmatpush.msra.mxu0 0.0
    %551 = vmatpush.msra.mxu0 0.0
    %552 = vmatpush.msra.mxu0 0.0
    %553 = vmatpush.msra.mxu0 0.0
    %554 = vmatpush.msra.mxu0 0.0
    %555 = vmatpush.msra.mxu0 0.0
    %556 = vmatpush.msra.mxu0 0.0
    %557 = vmatpush.msra.mxu0 0.0
    %558 = vmatpush.msra.mxu0 %v542
    %559 = vmatpush.msra.mxu0 %v403
    %560 = vmatmul.f32.gmra.mxu0 %v536
    %v561 = vpop.f32.mrf.mxu0
    %v562 = vadd.f32 0.0, %v561
    %563 = vmatmul.f32.gmra.mxu0 %v539
    %v564 = vpop.f32.mrf.mxu0
    %v565 = vadd.f32 0.0, %v564
    %566 = vdwg.mxu0
    %v567 = vsub.f32 %v427, %v562
    %v568 = vsub.f32 %v429, %v565
    %v569 = vmax.f32 %v567, 0.0
    %v570 = vmax.f32 %v568, 0.0
    %v571 = vadd.f32 %v403, %v569
    %v572 = vadd.f32 %v405, %v570
    %573 = vst [vmem:[#allocation2] sm:$0xff] %v571
    %574 = vst [vmem:[#allocation2 + $0x10] sm:$0x1f] %v572
    %575 = vmatpush.xpose.msra.mxu0 0.0
    %576 = vmatpush.xpose.msra.mxu0 0.0
    %577 = vmatpush.xpose.msra.mxu0 0.0
    %578 = vmatpush.xpose.msra.mxu0 0.0
    %579 = vmatpush.xpose.msra.mxu0 0.0
    %580 = vmatpush.xpose.msra.mxu0 0.0
    %581 = vmatpush.xpose.msra.mxu0 0.0
    %582 = vmatpush.xpose.msra.mxu0 0.0
    %583 = vmatpush.xpose.msra.mxu0 0.0
    %584 = vmatpush.xpose.msra.mxu0 0.0
    %585 = vmatpush.xpose.msra.mxu0 0.0
    %586 = vmatpush.xpose.msra.mxu0 0.0
    %587 = vmatpush.xpose.msra.mxu0 0.0
    %588 = vmatpush.xpose.msra.mxu0 0.0
    %589 = vmatpush.xpose.msra.mxu0 %v406
    %590 = vmatpush.xpose.msra.mxu0 %v404
    %591 = vmatmul.f32.gmra.mxu0 %v404
    %v592 = vpop.f32.mrf.mxu0
    %v593 = vadd.f32 0.0, %v592
    %594 = vmatmul.f32.gmra.mxu0 %v406
    %v595 = vpop.f32.mrf.mxu0
    %v596 = vadd.f32 0.0, %v595
    %597 = vdwg.mxu0
    %v598 = vsel %vm51, %v593, -inf
    %599 = vmax.xlane.f32.xlu0 %v598
    %v600 = vpop.xlane.xlu0 %599
    %v601 = vsel %vm457, %v596, -inf
    %602 = vmax.xlane.f32.xlu0 %v601
    %v603 = vpop.xlane.xlu0 %602
    %v604 = vsub.f32 %v593, %v600
    %v605 = vsub.f32 %v596, %v603
    %v606 = vmul.f32 %v604, 1.442695
    %v607 = vpow.pop %v606
    %v608 = vmul.f32 %v605, 1.442695
    %v609 = vpow.pop %v608
    %v610 = vsel %vm51, %v607, 0.0
    %611 = vadd.xlane.f32.xlu0 %v610
    %v612 = vpop.xlane.xlu0 %611
    %v613 = vsel %vm457, %v609, 0.0
    %614 = vadd.xlane.f32.xlu0 %v613
    %v615 = vpop.xlane.xlu0 %614
    %v616 = vrcp.pop %v612
    %v617 = vrcp.pop %v615
    %v618 = vmul.f32 %v607, %v616
    %v619 = vmul.f32 %v609, %v617
    %v620 = vsel %vm51, %v618, 0.0
    %v621 = vsel %vm457, %v619, 0.0
    %v622 = vadd.f32 %v620, %v621
    %v623 = vrot.slane %v622, 4
    %v624 = vadd.f32 %v622, %v623
    %v625 = vrot.slane %v624, 2
    %v626 = vadd.f32 %v624, %v625
    %v627 = vrot.slane %v626, 1
    %v628 = vadd.f32 %v626, %v627
    %v629 = vadd.f32 %v628, 1e-09
    %v630 = vrcp.pop %v629
    %v631 = vmul.f32 %v629, %v630
    %v632 = vsub.f32 1.0, %v631
    %v633 = vmul.f32 %v630, %v632
    %v634 = vadd.f32 %v630, %v633
    %vm635 = vweird.f32 %v629
    %vm636 = vweird.f32 %v630
    %vm637 = vmor %vm635, %vm636
    %v638 = vsel %vm637, %v630, %v634
    %v639 = vand.u32 2147483647, %v629
    %vm640 = vcmp.eq.f32.partialorder %v639, 8.507059e+37
    %v641 = vand.u32 %v629, 2147483648
    %v642 = vor.u32 1.1754944e-38, %v641
    %v643 = vsel %vm640, %v642, %v638
    %v644 = vmul.f32 %v618, %v643
    %v645 = vmul.f32 %v619, %v643
    %v647 = vsel %vm61, %v645, 0
    %649 = vmatpush.msra.mxu0 0.0
    %650 = vmatpush.msra.mxu0 0.0
    %651 = vmatpush.msra.mxu0 0.0
    %652 = vmatpush.msra.mxu0 0.0
    %653 = vmatpush.msra.mxu0 0.0
    %654 = vmatpush.msra.mxu0 0.0
    %655 = vmatpush.msra.mxu0 0.0
    %656 = vmatpush.msra.mxu0 0.0
    %657 = vmatpush.msra.mxu0 0.0
    %658 = vmatpush.msra.mxu0 0.0
    %659 = vmatpush.msra.mxu0 0.0
    %660 = vmatpush.msra.mxu0 0.0
    %661 = vmatpush.msra.mxu0 0.0
    %662 = vmatpush.msra.mxu0 0.0
    %663 = vmatpush.msra.mxu0 %v647
    %664 = vmatpush.msra.mxu0 %v644
    %665 = vmatmul.f32.gmra.mxu0 %v504
    %v666 = vpop.f32.mrf.mxu0
    %v667 = vadd.f32 0.0, %v666
    %668 = vmatmul.f32.gmra.mxu0 %v507
    %v669 = vpop.f32.mrf.mxu0
    %v670 = vadd.f32 0.0, %v669
    %671 = vdwg.mxu0
    %v673 = vsel %vm51, %v667, 0
    %v676 = vsel %vm51, %v670, 0
    %v679 = vsel %vm61, %v406, 0
    %681 = vmatpush.msra.mxu0 0.0
    %682 = vmatpush.msra.mxu0 0.0
    %683 = vmatpush.msra.mxu0 0.0
    %684 = vmatpush.msra.mxu0 0.0
    %685 = vmatpush.msra.mxu0 0.0
    %686 = vmatpush.msra.mxu0 0.0
    %687 = vmatpush.msra.mxu0 0.0
    %688 = vmatpush.msra.mxu0 0.0
    %689 = vmatpush.msra.mxu0 0.0
    %690 = vmatpush.msra.mxu0 0.0
    %691 = vmatpush.msra.mxu0 0.0
    %692 = vmatpush.msra.mxu0 0.0
    %693 = vmatpush.msra.mxu0 0.0
    %694 = vmatpush.msra.mxu0 0.0
    %695 = vmatpush.msra.mxu0 %v679
    %696 = vmatpush.msra.mxu0 %v404
    %697 = vmatmul.f32.gmra.mxu0 %v673
    %v698 = vpop.f32.mrf.mxu0
    %v699 = vadd.f32 0.0, %v698
    %700 = vmatmul.f32.gmra.mxu0 %v676
    %v701 = vpop.f32.mrf.mxu0
    %v702 = vadd.f32 0.0, %v701
    %703 = vdwg.mxu0
    %v704 = vsub.f32 %v428, %v699
    %v705 = vsub.f32 %v430, %v702
    %v706 = vmax.f32 %v704, 0.0
    %v707 = vmax.f32 %v705, 0.0
    %v708 = vadd.f32 %v404, %v706
    %v709 = vadd.f32 %v406, %v707
    %710 = vst [vmem:[#allocation2 + $0x8] sm:$0xff] %v708
    %711 = vst [vmem:[#allocation2 + $0x18] sm:$0x1f] %v709
    // Predicated region
    $region22: #{tpu_custom_call.1} parent=1 // pred_check
      _
    $region23: #{tpu_custom_call.1} parent=1 // pred_check_branch
      %713 = sbr.rel (0) target = $region25
    $region24: #{tpu_custom_call.1} parent=1 // pred_region
      %715 = vsyncadd [#allocation3], 0
      %s716 = sshll.u32 [#allocation2], 4
      %s717 = int_to_ptr.vmem [resolvable:$true] %s716
      %s718 = sshll.u32 %s5, 4
      %s719 = int_to_ptr.hbm [resolvable:$true] %s718
      %724 = dma.vmem_to_hbm [thread:$0]  %s717, 512, %s719, [#allocation3], 256, 256, 16
    $region25: #{tpu_custom_call.1} parent=1 // pred_fallthru
      _
    // Predicated region
    $region26: #{tpu_custom_call.1} parent=1 // pred_check
      _
    $region27: #{tpu_custom_call.1} parent=1 // pred_check_branch
      %726 = sbr.rel (0) target = $region29
    $region28: #{tpu_custom_call.1} parent=1 // pred_region
      %728 = dma.done [#allocation3], 512
    $region29: #{tpu_custom_call.1} parent=1 // pred_fallthru
      _
    %729 = vsyncpa [#allocation3], 1

</llo_original>
